<compile_context>
chip_gen: v5e
topology: v5e:2x2
jax: 0.10.0
libtpu: 0.0.40
codegen_flags: <defaults>
</compile_context>

<pallas_src>
import functools

import jax
import jax.numpy as jnp
from jax.experimental import pallas as pl
from jax.experimental.pallas import tpu as pltpu


# ----------------------------------------------------------------------------
# Tiling helper: full dim if small, else the largest aligned divisor <= cap.
# ----------------------------------------------------------------------------
def _tile(dim, cap, align):
    if dim <= cap:
        return dim
    best = None
    t = align
    while t <= cap:
        if dim % t == 0:
            best = t
        t += align
    return best if best is not None else dim


# ----------------------------------------------------------------------------
# Kernel 1: tiled matmul  Y = X @ W + b  (+ optional residual, optional ReLU)
#   grid = (M/tm, N/tn, K/tk), f32 VMEM accumulator, init/finalize via pl.when.
# ----------------------------------------------------------------------------
def _matmul_kernel(*refs, relu, has_residual):
    if has_residual:
        x_ref, w_ref, b_ref, r_ref, o_ref, acc_ref = refs
    else:
        x_ref, w_ref, b_ref, o_ref, acc_ref = refs
        r_ref = None
    k = pl.program_id(2)

    @pl.when(k == 0)
    def _():
        acc_ref[...] = jnp.zeros_like(acc_ref)

    acc_ref[...] += jnp.dot(x_ref[...], w_ref[...],
                            preferred_element_type=jnp.float32)

    @pl.when(k == pl.num_programs(2) - 1)
    def _():
        acc = acc_ref[...] + b_ref[...].astype(jnp.float32)
        if relu:
            acc = jnp.maximum(acc, 0.0)
        if has_residual:
            acc = acc + r_ref[...].astype(jnp.float32)
        o_ref[...] = acc.astype(o_ref.dtype)


def matmul(x, w, b, *, residual=None, relu=False,
           tm_cap=256, tn_cap=512, tk_cap=512):
    M, K = x.shape
    N = w.shape[1]
    tm = _tile(M, tm_cap, 8)
    tn = _tile(N, tn_cap, 128)
    tk = _tile(K, tk_cap, 128)
    grid = (M // tm, N // tn, K // tk)

    in_specs = [
        pl.BlockSpec((tm, tk), lambda i, j, k: (i, k)),
        pl.BlockSpec((tk, tn), lambda i, j, k: (k, j)),
        pl.BlockSpec((1, tn), lambda i, j, k: (0, j)),
    ]
    args = [x, w, b.reshape(1, N)]
    if residual is not None:
        in_specs.append(pl.BlockSpec((tm, tn), lambda i, j, k: (i, j)))
        args.append(residual)

    return pl.pallas_call(
        functools.partial(_matmul_kernel, relu=relu,
                          has_residual=residual is not None),
        out_shape=jax.ShapeDtypeStruct((M, N), x.dtype),
        grid=grid,
        in_specs=in_specs,
        out_specs=pl.BlockSpec((tm, tn), lambda i, j, k: (i, j)),
        scratch_shapes=[pltpu.VMEM((tm, tn), jnp.float32)],
        compiler_params=pltpu.CompilerParams(
            dimension_semantics=("parallel", "parallel", "arbitrary")),
        cost_estimate=pl.CostEstimate(
            flops=2 * M * N * K, transcendentals=0,
            bytes_accessed=4 * (M * K + K * N + 2 * M * N)),
    )(*args)


# ----------------------------------------------------------------------------
# Kernel 2: LayerNorm fused into the consumer matmul:  Y = LN(X) @ W + b (+ReLU)
#   LN needs the full feature row, so K is not tiled (K = d_model is small).
#   LN flavour matches torch x.std(): unbiased variance, eps added to std.
# ----------------------------------------------------------------------------
def _ln_matmul_kernel(x_ref, g_ref, bln_ref, w_ref, b_ref, o_ref, *, relu, eps):
    x = x_ref[...].astype(jnp.float32)                     # (tm, K)
    d = x.shape[-1]
    mean = jnp.mean(x, axis=-1, keepdims=True)
    xc = x - mean
    var = jnp.sum(xc * xc, axis=-1, keepdims=True) / (d - 1)   # unbiased (ddof=1)
    std = jnp.sqrt(var)
    xn = g_ref[...].astype(jnp.float32) * xc / (std + eps) \
        + bln_ref[...].astype(jnp.float32)
    acc = jnp.dot(xn.astype(w_ref.dtype), w_ref[...],
                  preferred_element_type=jnp.float32)
    acc = acc + b_ref[...].astype(jnp.float32)
    if relu:
        acc = jnp.maximum(acc, 0.0)
    o_ref[...] = acc.astype(o_ref.dtype)


def ln_matmul(x, gamma, beta, w, b, *, relu=False, eps=1e-6,
              tm_cap=256, tn_cap=512):
    M, K = x.shape
    N = w.shape[1]
    tm = _tile(M, tm_cap, 8)
    tn = _tile(N, tn_cap, 128)
    grid = (M // tm, N // tn)
    return pl.pallas_call(
        functools.partial(_ln_matmul_kernel, relu=relu, eps=eps),
        out_shape=jax.ShapeDtypeStruct((M, N), x.dtype),
        grid=grid,
        in_specs=[
            pl.BlockSpec((tm, K), lambda i, j: (i, 0)),
            pl.BlockSpec((1, K), lambda i, j: (0, 0)),
            pl.BlockSpec((1, K), lambda i, j: (0, 0)),
            pl.BlockSpec((K, tn), lambda i, j: (0, j)),
            pl.BlockSpec((1, tn), lambda i, j: (0, j)),
        ],
        out_specs=pl.BlockSpec((tm, tn), lambda i, j: (i, j)),
        compiler_params=pltpu.CompilerParams(
            dimension_semantics=("parallel", "parallel")),
        cost_estimate=pl.CostEstimate(
            flops=2 * M * N * K, transcendentals=M,
            bytes_accessed=4 * (M * K + K * N + M * N)),
    )(x, gamma.reshape(1, K), beta.reshape(1, K), w, b.reshape(1, N))


# ----------------------------------------------------------------------------
# Kernel 3: multi-head attention — one batch per grid step, all heads in-kernel,
#           lane-dense (Tq, d_model) output.  Score scale pre-folded into Wq/bq.
#           Masks kept at native shape; broadcast happens in VMEM.
# ----------------------------------------------------------------------------
def _attn_core(q, k, v, mask, num_heads, out_dtype):
    d = q.shape[-1]
    dk = d // num_heads
    neg = jnp.float32(-1e9)
    outs = []
    for h_i in range(num_heads):
        lo, hi = h_i * dk, (h_i + 1) * dk
        qh, kh, vh = q[:, lo:hi], k[:, lo:hi], v[:, lo:hi]
        s = jax.lax.dot_general(qh, kh, (((1,), (1,)), ((), ())),
                                preferred_element_type=jnp.float32)
        s = jnp.where(mask == 0.0, neg, s)          # masked_fill(mask==0, -1e9)
        s = s - jnp.max(s, axis=-1, keepdims=True)
        p = jnp.exp(s)
        p = p * pl.reciprocal(jnp.sum(p, axis=-1, keepdims=True), approx=True)
        outs.append(jnp.dot(p.astype(vh.dtype), vh,
                            preferred_element_type=jnp.float32))
    return jnp.concatenate(outs, axis=-1).astype(out_dtype)


def _self_attn_kernel(qkv_ref, m_ref, o_ref, *, num_heads, d_model):
    qkv = qkv_ref[0]                                 # (Tq, 3d)
    q = qkv[:, :d_model]
    k = qkv[:, d_model:2 * d_model]
    v = qkv[:, 2 * d_model:]
    o_ref[0] = _attn_core(q, k, v, m_ref[0], num_heads, o_ref.dtype)


def _cross_attn_kernel(q_ref, kv_ref, m_ref, o_ref, *, num_heads, d_model):
    q = q_ref[0]                                     # (Tq, d)
    kv = kv_ref[0]                                   # (Tk, 2d)
    k = kv[:, :d_model]
    v = kv[:, d_model:]
    o_ref[0] = _attn_core(q, k, v, m_ref[0], num_heads, o_ref.dtype)


def self_attention(qkv, mask, num_heads, d_model):
    B, T, _ = qkv.shape
    mask = mask.astype(jnp.float32)
    Mq, Tk = mask.shape[1], mask.shape[2]
    return pl.pallas_call(
        functools.partial(_self_attn_kernel, num_heads=num_heads, d_model=d_model),
        out_shape=jax.ShapeDtypeStruct((B, T, d_model), qkv.dtype),
        grid=(B,),
        in_specs=[
            pl.BlockSpec((1, T, 3 * d_model), lambda b: (b, 0, 0)),
            pl.BlockSpec((1, Mq, Tk), lambda b: (b, 0, 0)),
        ],
        out_specs=pl.BlockSpec((1, T, d_model), lambda b: (b, 0, 0)),
        compiler_params=pltpu.CompilerParams(dimension_semantics=("parallel",)),
    )(qkv, mask)


def cross_attention(q, kv, mask, num_heads, d_model):
    B, T, _ = q.shape
    S = kv.shape[1]
    mask = mask.astype(jnp.float32)
    Mq, Tk = mask.shape[1], mask.shape[2]
    return pl.pallas_call(
        functools.partial(_cross_attn_kernel, num_heads=num_heads, d_model=d_model),
        out_shape=jax.ShapeDtypeStruct((B, T, d_model), q.dtype),
        grid=(B,),
        in_specs=[
            pl.BlockSpec((1, T, d_model), lambda b: (b, 0, 0)),
            pl.BlockSpec((1, S, 2 * d_model), lambda b: (b, 0, 0)),
            pl.BlockSpec((1, Mq, Tk), lambda b: (b, 0, 0)),
        ],
        out_specs=pl.BlockSpec((1, T, d_model), lambda b: (b, 0, 0)),
        compiler_params=pltpu.CompilerParams(dimension_semantics=("parallel",)),
    )(q, kv, mask)


# ----------------------------------------------------------------------------
# Kernel 4: standalone row-tiled LayerNorm (final self.norms only)
# ----------------------------------------------------------------------------
def _layernorm_kernel(x_ref, g_ref, b_ref, o_ref, *, eps):
    x = x_ref[...].astype(jnp.float32)               # (tm, d)
    d = x.shape[-1]
    mean = jnp.mean(x, axis=-1, keepdims=True)
    xc = x - mean
    var = jnp.sum(xc * xc, axis=-1, keepdims=True) / (d - 1)
    std = jnp.sqrt(var)
    o_ref[...] = (g_ref[...] * xc / (std + eps) + b_ref[...]).astype(o_ref.dtype)


def layernorm(x2d, gamma, beta, eps=1e-6, tm_cap=512):
    M, d = x2d.shape
    tm = _tile(M, tm_cap, 8)
    return pl.pallas_call(
        functools.partial(_layernorm_kernel, eps=eps),
        out_shape=jax.ShapeDtypeStruct((M, d), x2d.dtype),
        grid=(M // tm,),
        in_specs=[
            pl.BlockSpec((tm, d), lambda i: (i, 0)),
            pl.BlockSpec((1, d), lambda i: (0, 0)),
            pl.BlockSpec((1, d), lambda i: (0, 0)),
        ],
        out_specs=pl.BlockSpec((tm, d), lambda i: (i, 0)),
        compiler_params=pltpu.CompilerParams(dimension_semantics=("parallel",)),
    )(x2d, gamma.reshape(1, d), beta.reshape(1, d))


# ----------------------------------------------------------------------------
# Decoder forward (wrapper keeps activations as 2-D [B*T, d] slabs; no transposes)
# ----------------------------------------------------------------------------
def decoder_layer_forward(x2, mem2, B, T, S, src_mask, tgt_mask, p, h, d):
    # sublayer 0: masked self-attention  (LN fused into QKV proj; residual fused into Wo)
    qkv = ln_matmul(x2, p["ln0_g"], p["ln0_b"], p["sa_wqkv"], p["sa_bqkv"])
    attn = self_attention(qkv.reshape(B, T, 3 * d), tgt_mask, h, d)
    x2 = matmul(attn.reshape(B * T, d), p["sa_wo"], p["sa_bo"], residual=x2)

    # sublayer 1: cross-attention with memory (memory is NOT layer-normed, per reference)
    q = ln_matmul(x2, p["ln1_g"], p["ln1_b"], p["ca_wq"], p["ca_bq"])
    kv = matmul(mem2, p["ca_wkv"], p["ca_bkv"])
    attn = cross_attention(q.reshape(B, T, d), kv.reshape(B, S, 2 * d), src_mask, h, d)
    x2 = matmul(attn.reshape(B * T, d), p["ca_wo"], p["ca_bo"], residual=x2)

    # sublayer 2: position-wise FFN  (LN fused into w1; residual fused into w2)
    hdn = ln_matmul(x2, p["ln2_g"], p["ln2_b"], p["ff_w1"], p["ff_b1"], relu=True)
    x2 = matmul(hdn, p["ff_w2"], p["ff_b2"], residual=x2)
    return x2


def decoder_forward(x, memory, src_mask, tgt_mask, params, h):
    B, T, d = x.shape
    S = memory.shape[1]
    x2 = x.reshape(B * T, d)
    mem2 = memory.reshape(B * S, d)
    for p in params["layers"]:
        x2 = decoder_layer_forward(x2, mem2, B, T, S, src_mask, tgt_mask, p, h, d)
    out2 = layernorm(x2, params["final_ln_g"], params["final_ln_b"])
    return out2.reshape(B, T, d)


# ----------------------------------------------------------------------------
# Deterministic parameter init (weights stored as (in, out): y = x @ W + b).
# QKV / KV weights are concatenated; 1/sqrt(dk) folded into Wq, bq.
# ----------------------------------------------------------------------------
def _init_attn(key, d, h):
    dk = d // h
    scale = 1.0 / (dk ** 0.5)
    ks = jax.random.split(key, 8)
    w = lambda k, s: jax.random.normal(k, s, jnp.float32) * 0.02
    wq, bq = w(ks[0], (d, d)) * scale, w(ks[1], (d,)) * scale
    wk, bk = w(ks[2], (d, d)), w(ks[3], (d,))
    wv, bv = w(ks[4], (d, d)), w(ks[5], (d,))
    wo, bo = w(ks[6], (d, d)), w(ks[7], (d,))
    return wq, bq, wk, bk, wv, bv, wo, bo


def init_decoder_params(key, n_layers, d_model, d_ff, n_heads):
    layers = []
    keys = jax.random.split(key, n_layers)
    for lk in keys:
        ks = jax.random.split(lk, 6)
        w = lambda k, s: jax.random.normal(k, s, jnp.float32) * 0.02
        swq, sbq, swk, sbk, swv, sbv, swo, sbo = _init_attn(ks[0], d_model, n_heads)
        cwq, cbq, cwk, cbk, cwv, cbv, cwo, cbo = _init_attn(ks[1], d_model, n_heads)
        layers.append({
            "sa_wqkv": jnp.concatenate([swq, swk, swv], axis=1),
            "sa_bqkv": jnp.concatenate([sbq, sbk, sbv]),
            "sa_wo": swo, "sa_bo": sbo,
            "ca_wq": cwq, "ca_bq": cbq,
            "ca_wkv": jnp.concatenate([cwk, cwv], axis=1),
            "ca_bkv": jnp.concatenate([cbk, cbv]),
            "ca_wo": cwo, "ca_bo": cbo,
            "ff_w1": w(ks[2], (d_model, d_ff)), "ff_b1": w(ks[3], (d_ff,)),
            "ff_w2": w(ks[4], (d_ff, d_model)), "ff_b2": w(ks[5], (d_model,)),
            "ln0_g": jnp.ones((d_model,), jnp.float32),
            "ln0_b": jnp.zeros((d_model,), jnp.float32),
            "ln1_g": jnp.ones((d_model,), jnp.float32),
            "ln1_b": jnp.zeros((d_model,), jnp.float32),
            "ln2_g": jnp.ones((d_model,), jnp.float32),
            "ln2_b": jnp.zeros((d_model,), jnp.float32),
        })
    return {
        "layers": layers,
        "final_ln_g": jnp.ones((d_model,), jnp.float32),
        "final_ln_b": jnp.zeros((d_model,), jnp.float32),
    }


if __name__ == "__main__":
    B, T, S = 2, 8, 8            # batch, target seq, source seq
    d_model, d_ff, n_heads, n_layers = 32, 64, 4, 2

    key = jax.random.PRNGKey(0)
    kx, km, kp = jax.random.split(key, 3)

    x = jax.random.normal(kx, (B, T, d_model), jnp.float32)
    memory = jax.random.normal(km, (B, S, d_model), jnp.float32)

    # src_mask: (B, 1, S) — mask out last source position of batch 1
    src_mask = jnp.ones((B, 1, S), jnp.float32).at[1, 0, -1].set(0.0)
    # target_mask: (B, T, T) causal (subsequent) mask
    tgt_mask = jnp.broadcast_to(jnp.tril(jnp.ones((T, T), jnp.float32)), (B, T, T))

    params = init_decoder_params(kp, n_layers, d_model, d_ff, n_heads)

    out = decoder_forward(x, memory, src_mask, tgt_mask, params, n_heads)
    jax.block_until_ready(out)
    assert out.shape == (B, T, d_model) and out.dtype == jnp.float32
    assert bool(jnp.all(jnp.isfinite(out)))
    print("KERNEL_OK")
</pallas_src>

<mosaic_0001>
module attributes {stable_mosaic.version = 11 : i64} {
  func.func @_ln_matmul_kernel(%arg0: i32, %arg1: i32, %arg2: memref<16x32xf32, #tpu.memory_space<vmem>>, %arg3: memref<1x32xf32, #tpu.memory_space<vmem>>, %arg4: memref<1x32xf32, #tpu.memory_space<vmem>>, %arg5: memref<32x96xf32, #tpu.memory_space<vmem>>, %arg6: memref<1x96xf32, #tpu.memory_space<vmem>>, %arg7: memref<16x96xf32, #tpu.memory_space<vmem>>) attributes {dimension_semantics = [#tpu.dimension_semantics<parallel>, #tpu.dimension_semantics<parallel>], iteration_bounds = array<i64: 1, 1>, scalar_prefetch = 0 : i64, scratch_operands = 0 : i64, tpu.core_type = #tpu.core_type<tc>, window_params = [{transform_indices = @transform_0, window_bounds = array<i64: 16, 32>}, {pipeline_mode = #tpu.pipeline_mode<synchronous>, transform_indices = @transform_1, window_bounds = array<i64: 1, 32>}, {pipeline_mode = #tpu.pipeline_mode<synchronous>, transform_indices = @transform_2, window_bounds = array<i64: 1, 32>}, {transform_indices = @transform_3, window_bounds = array<i64: 32, 96>}, {transform_indices = @transform_4, window_bounds = array<i64: 1, 96>}, {transform_indices = @transform_5, window_bounds = array<i64: 16, 96>}]} {
    %c0 = arith.constant 0 : index
    %c0_0 = arith.constant 0 : index
    %0 = vector.load %arg2[%c0, %c0_0] : memref<16x32xf32, #tpu.memory_space<vmem>>, vector<16x32xf32>
    %cst = arith.constant dense<0.000000e+00> : vector<16xf32>
    %1 = vector.multi_reduction <add>, %0, %cst [1] : vector<16x32xf32> to vector<16xf32>
    %2 = vector.shape_cast %1 : vector<16xf32> to vector<16x1xf32>
    %cst_1 = arith.constant 3.200000e+01 : f32
    %3 = vector.broadcast %cst_1 : f32 to vector<16x1xf32>
    %4 = arith.divf %2, %3 : vector<16x1xf32>
    %5 = vector.broadcast %4 : vector<16x1xf32> to vector<16x32xf32>
    %6 = arith.subf %0, %5 : vector<16x32xf32>
    %7 = arith.mulf %6, %6 : vector<16x32xf32>
    %cst_2 = arith.constant dense<0.000000e+00> : vector<16xf32>
    %8 = vector.multi_reduction <add>, %7, %cst_2 [1] : vector<16x32xf32> to vector<16xf32>
    %9 = vector.shape_cast %8 : vector<16xf32> to vector<16x1xf32>
    %cst_3 = arith.constant 3.100000e+01 : f32
    %10 = vector.broadcast %cst_3 : f32 to vector<16x1xf32>
    %11 = arith.divf %9, %10 : vector<16x1xf32>
    %12 = math.sqrt %11 : vector<16x1xf32>
    %c0_4 = arith.constant 0 : index
    %c0_5 = arith.constant 0 : index
    %13 = vector.load %arg3[%c0_4, %c0_5] : memref<1x32xf32, #tpu.memory_space<vmem>>, vector<1x32xf32>
    %14 = vector.broadcast %13 : vector<1x32xf32> to vector<16x32xf32>
    %15 = arith.mulf %14, %6 : vector<16x32xf32>
    %cst_6 = arith.constant 9.99999997E-7 : f32
    %16 = vector.broadcast %cst_6 : f32 to vector<16x1xf32>
    %17 = arith.addf %12, %16 : vector<16x1xf32>
    %18 = vector.broadcast %17 : vector<16x1xf32> to vector<16x32xf32>
    %19 = arith.divf %15, %18 : vector<16x32xf32>
    %c0_7 = arith.constant 0 : index
    %c0_8 = arith.constant 0 : index
    %20 = vector.load %arg4[%c0_7, %c0_8] : memref<1x32xf32, #tpu.memory_space<vmem>>, vector<1x32xf32>
    %21 = vector.broadcast %20 : vector<1x32xf32> to vector<16x32xf32>
    %22 = arith.addf %19, %21 : vector<16x32xf32>
    %c0_9 = arith.constant 0 : index
    %c0_10 = arith.constant 0 : index
    %23 = vector.load %arg5[%c0_9, %c0_10] : memref<32x96xf32, #tpu.memory_space<vmem>>, vector<32x96xf32>
    %cst_11 = arith.constant dense<0.000000e+00> : vector<16x96xf32>
    %24 = tpu.matmul %22, %23, %cst_11 {dimension_numbers = #tpu.dot_dimension_numbers<[1], [0], [0], [1], [0, 0, 1, 1], [], []>} : vector<16x32xf32>, vector<32x96xf32>, vector<16x96xf32> -> vector<16x96xf32>
    %c0_12 = arith.constant 0 : index
    %c0_13 = arith.constant 0 : index
    %25 = vector.load %arg6[%c0_12, %c0_13] : memref<1x96xf32, #tpu.memory_space<vmem>>, vector<1x96xf32>
    %26 = vector.broadcast %25 : vector<1x96xf32> to vector<16x96xf32>
    %27 = arith.addf %24, %26 : vector<16x96xf32>
    %c0_14 = arith.constant 0 : index
    %c0_15 = arith.constant 0 : index
    %28 = vector.load %arg7[%c0_14, %c0_15] : memref<16x96xf32, #tpu.memory_space<vmem>>, vector<16x96xf32>
    tpu.vector_store %arg7[%c0_14, %c0_15], %27 {strides = array<i32>} : memref<16x96xf32, #tpu.memory_space<vmem>>, vector<16x96xf32>,
    return
  }
  func.func @transform_0(%arg0: i32, %arg1: i32) -> (i32, i32) {
    %c0_i32 = arith.constant 0 : i32
    %c0_i32_0 = arith.constant 0 : i32
    return %arg0, %c0_i32 : i32, i32
  }
  func.func @transform_1(%arg0: i32, %arg1: i32) -> (i32, i32) {
    %c0_i32 = arith.constant 0 : i32
    %c0_i32_0 = arith.constant 0 : i32
    %c0_i32_1 = arith.constant 0 : i32
    return %c0_i32, %c0_i32_0 : i32, i32
  }
  func.func @transform_2(%arg0: i32, %arg1: i32) -> (i32, i32) {
    %c0_i32 = arith.constant 0 : i32
    %c0_i32_0 = arith.constant 0 : i32
    %c0_i32_1 = arith.constant 0 : i32
    return %c0_i32, %c0_i32_0 : i32, i32
  }
  func.func @transform_3(%arg0: i32, %arg1: i32) -> (i32, i32) {
    %c0_i32 = arith.constant 0 : i32
    %c0_i32_0 = arith.constant 0 : i32
    return %c0_i32, %arg1 : i32, i32
  }
  func.func @transform_4(%arg0: i32, %arg1: i32) -> (i32, i32) {
    %c0_i32 = arith.constant 0 : i32
    %c0_i32_0 = arith.constant 0 : i32
    return %c0_i32, %arg1 : i32, i32
  }
  func.func @transform_5(%arg0: i32, %arg1: i32) -> (i32, i32) {
    %c0_i32 = arith.constant 0 : i32
    return %arg0, %arg1 : i32, i32
  }
}

</mosaic_0001>

<llo_original>
// kernel: tpu_custom_call.1
$region0: #{tpu_custom_call.1}
  #allocation0 [shape = 'u32[]', space=smem, size = 0x4, offset = 0x4, fixed_abs, tag = 'smem constant byte address 0x4 - core index']
  #allocation1 [shape = 'u32[72,128]{1,0:T(1,128)}', space=vmem, size = 0x9000, scoped, tag = 'internal scratch']
  %s0 = inlined_call_operand.hbm [shape: f32[16,32], index: 0, kind: input, shape index: {}]
  %s1 = inlined_call_operand.hbm [shape: f32[1,32], index: 1, kind: input, shape index: {}]
  %s2 = inlined_call_operand.vmem [shape: f32[1,32], index: 2, kind: input, shape index: {}]
  %s3 = inlined_call_operand.hbm [shape: f32[32,96], index: 3, kind: input, shape index: {}]
  %s4 = inlined_call_operand.vmem [shape: f32[1,96], index: 4, kind: input, shape index: {}]
  %s5 = inlined_call_operand.hbm [shape: f32[16,96], index: 5, kind: output, shape index: {}]
  %s6 = sld [smem:[#allocation0]]
  $region42: #{tpu_custom_call.1} parent=0
    _
  %s8 = ssub.s32 1, %s6
  %s9 = scalar_select 0, %s8, %s6
  $region1: #{tpu_custom_call.1} parent=0
    #allocation2 [shape = 'u8[8192]{0}', space=vmem, size = 0x2000, scoped, tag = 'input window, operand 0, single buffered']
    #allocation3 [shape = 's32[1]{0}', space=sflag, size = 0x4, scoped, tag = 'scoped memory for tpu_custom_call.1']
    #allocation4 [shape = 's32[1]{0}', space=sflag, size = 0x4, scoped, tag = 'scoped memory for tpu_custom_call.1']
    #allocation5 [shape = 'u8[512]{0}', space=vmem, size = 0x400, scoped, tag = 'input window, operand 1, single buffered']
    #allocation6 [shape = 's32[1]{0}', space=sflag, size = 0x4, scoped, tag = 'scoped memory for tpu_custom_call.1']
    #allocation7 [shape = 'u8[16384]{0}', space=vmem, size = 0x4000, scoped, tag = 'input window, operand 3, single buffered']
    #allocation8 [shape = 'u8[8192]{0}', space=vmem, size = 0x2000, scoped, tag = 'output window, operand 0, single buffered']
    %10 = vsyncpa [#allocation3], 0
    %11 = vsyncpa [#allocation6], 0
    %12 = vsyncpa [#allocation4], 0
    // Predicated region
    $region2: #{tpu_custom_call.1} parent=1 // pred_check
      _
    $region3: #{tpu_custom_call.1} parent=1 // pred_check_branch
      %14 = sbr.rel (0) target = $region5
    $region4: #{tpu_custom_call.1} parent=1 // pred_region
      %16 = vsyncadd [#allocation3], 0
      %s17 = sshll.u32 %s0, 4
      %s18 = int_to_ptr.hbm [resolvable:$true] %s17
      %s19 = sshll.u32 [#allocation2], 4
      %s20 = int_to_ptr.vmem [resolvable:$true] %s19
      %25 = dma.hbm_to_vmem [thread:$0]  %s18, 256, %s20, [#allocation3], 128, 128, 8
    $region5: #{tpu_custom_call.1} parent=1 // pred_fallthru
      _
    // Predicated region
    $region6: #{tpu_custom_call.1} parent=1 // pred_check
      _
    $region7: #{tpu_custom_call.1} parent=1 // pred_check_branch
      %27 = sbr.rel (0) target = $region9
    $region8: #{tpu_custom_call.1} parent=1 // pred_region
      %29 = vsyncadd [#allocation6], 0
      %s31 = sshll.u32 %s1, 4
      %s32 = int_to_ptr.hbm [resolvable:$true] %s31
      %s33 = sshll.u32 [#allocation5], 4
      %s34 = int_to_ptr.vmem [resolvable:$true] %s33
      %36 = dma.hbm_to_vmem [thread:$0]  %s32, 16, %s34, [#allocation6]
    $region9: #{tpu_custom_call.1} parent=1 // pred_fallthru
      _
    // Predicated region
    $region10: #{tpu_custom_call.1} parent=1 // pred_check
      _
    $region11: #{tpu_custom_call.1} parent=1 // pred_check_branch
      %38 = sbr.rel (0) target = $region13
    $region12: #{tpu_custom_call.1} parent=1 // pred_region
      _
    $region13: #{tpu_custom_call.1} parent=1 // pred_fallthru
      _
    // Predicated region
    $region14: #{tpu_custom_call.1} parent=1 // pred_check
      _
    $region15: #{tpu_custom_call.1} parent=1 // pred_check_branch
      %40 = sbr.rel (0) target = $region17
    $region16: #{tpu_custom_call.1} parent=1 // pred_region
      %42 = vsyncadd [#allocation6], 0
      %s43 = sshll.u32 %s3, 4
      %s44 = int_to_ptr.hbm [resolvable:$true] %s43
      %s45 = sshll.u32 [#allocation7], 4
      %s46 = int_to_ptr.vmem [resolvable:$true] %s45
      %51 = dma.hbm_to_vmem [thread:$0]  %s44, 512, %s46, [#allocation6], 128, 128, 8
    $region17: #{tpu_custom_call.1} parent=1 // pred_fallthru
      _
    // Predicated region
    $region18: #{tpu_custom_call.1} parent=1 // pred_check
      _
    $region19: #{tpu_custom_call.1} parent=1 // pred_check_branch
      %53 = sbr.rel (0) target = $region21
    $region20: #{tpu_custom_call.1} parent=1 // pred_region
      _
    $region21: #{tpu_custom_call.1} parent=1 // pred_fallthru
      _
    // Predicated region
    $region22: #{tpu_custom_call.1} parent=1 // pred_check
      _
    $region23: #{tpu_custom_call.1} parent=1 // pred_check_branch
      %55 = sbr.rel (0) target = $region25
    $region24: #{tpu_custom_call.1} parent=1 // pred_region
      %57 = dma.done [#allocation3], 256
    $region25: #{tpu_custom_call.1} parent=1 // pred_fallthru
      _
    // Predicated region
    $region26: #{tpu_custom_call.1} parent=1 // pred_check
      _
    $region27: #{tpu_custom_call.1} parent=1 // pred_check_branch
      %59 = sbr.rel (0) target = $region29
    $region28: #{tpu_custom_call.1} parent=1 // pred_region
      %61 = dma.done [#allocation6], 16
    $region29: #{tpu_custom_call.1} parent=1 // pred_fallthru
      _
    // Predicated region
    $region30: #{tpu_custom_call.1} parent=1 // pred_check
      _
    $region31: #{tpu_custom_call.1} parent=1 // pred_check_branch
      %63 = sbr.rel (0) target = $region33
    $region32: #{tpu_custom_call.1} parent=1 // pred_region
      %65 = dma.done [#allocation6], 512
    $region33: #{tpu_custom_call.1} parent=1 // pred_fallthru
      _
    %v66 = vld [vmem:[#allocation2] sm:$0xff]
    %v67 = vld [vmem:[#allocation2 + $0x8] sm:$0xff]
    %vm68 = vcmask 261120
    %v69 = vsel %vm68, %v66, 0.0
    %70 = vadd.xlane.f32.xlu0 %v69
    %v71 = vpop.xlane.xlu0 %70
    %v72 = vsel %vm68, %v67, 0.0
    %73 = vadd.xlane.f32.xlu0 %v72
    %v74 = vpop.xlane.xlu0 %73
    %v75 = vrcp.pop 32.0
    %v76 = vmul.f32 32.0, %v75
    %v77 = vsub.f32 1.0, %v76
    %v78 = vmul.f32 %v75, %v77
    %v79 = vadd.f32 %v75, %v78
    %vm80 = vweird.f32 %v75
    %v81 = vsel %vm80, %v75, %v79
    %v82 = vmul.f32 %v71, %v81
    %v83 = vmul.f32 %v74, %v81
    %v84 = vsub.f32 %v66, %v82
    %v85 = vsub.f32 %v67, %v83
    %v86 = vmul.f32 %v84, %v84
    %v87 = vmul.f32 %v85, %v85
    %v88 = vsel %vm68, %v86, 0.0
    %89 = vadd.xlane.f32.xlu0 %v88
    %v90 = vpop.xlane.xlu0 %89
    %v91 = vsel %vm68, %v87, 0.0
    %92 = vadd.xlane.f32.xlu0 %v91
    %v93 = vpop.xlane.xlu0 %92
    %v94 = vrcp.pop 31.0
    %v95 = vmul.f32 31.0, %v94
    %v96 = vsub.f32 1.0, %v95
    %v97 = vmul.f32 %v94, %v96
    %v98 = vadd.f32 %v94, %v97
    %vm99 = vweird.f32 %v94
    %v100 = vsel %vm99, %v94, %v98
    %v101 = vmul.f32 %v90, %v100
    %v102 = vmul.f32 %v93, %v100
    %v103 = vrsqrt.pop %v101
    %v104 = vmul.f32 %v103, %v101
    %v105 = vmul.f32 %v104, %v103
    %v106 = vmul.f32 0.5, %v105
    %v107 = vsub.f32 1.5, %v106
    %v108 = vmul.f32 %v103, %v107
    %v109 = vmul.f32 %v101, %v108
    %vm110 = vcmp.eq.f32.partialorder %v101, inf
    %v111 = vsel %vm110, %v101, %v109
    %vm112 = vcmp.eq.f32.partialorder %v101, 0.0
    %v113 = vand.u32 %v101, 2147483648
    %v114 = vsel %vm112, %v113, %v111
    %v115 = vrsqrt.pop %v102
    %v116 = vmul.f32 %v115, %v102
    %v117 = vmul.f32 %v116, %v115
    %v118 = vmul.f32 0.5, %v117
    %v119 = vsub.f32 1.5, %v118
    %v120 = vmul.f32 %v115, %v119
    %v121 = vmul.f32 %v102, %v120
    %vm122 = vcmp.eq.f32.partialorder %v102, inf
    %v123 = vsel %vm122, %v102, %v121
    %vm124 = vcmp.eq.f32.partialorder %v102, 0.0
    %v125 = vand.u32 %v102, 2147483648
    %v126 = vsel %vm124, %v125, %v123
    %v127 = vld [vmem:[#allocation5] sm:$0x1]
    %v129 = vperm.slane %v127, 0
    %v131 = vmul.f32 %v129, %v84
    %v132 = vmul.f32 %v129, %v85
    %v133 = vadd.f32 %v114, 1e-06
    %v134 = vadd.f32 %v126, 1e-06
    %v135 = vrcp.pop %v133
    %v136 = vmul.f32 %v133, %v135
    %v137 = vsub.f32 1.0, %v136
    %v138 = vmul.f32 %v135, %v137
    %v139 = vadd.f32 %v135, %v138
    %vm140 = vweird.f32 %v133
    %vm141 = vweird.f32 %v135
    %vm142 = vmor %vm140, %vm141
    %v143 = vsel %vm142, %v135, %v139
    %v144 = vand.u32 2147483647, %v133
    %vm145 = vcmp.eq.f32.partialorder %v144, 8.507059e+37
    %v146 = vand.u32 %v133, 2147483648
    %v147 = vor.u32 1.1754944e-38, %v146
    %v148 = vsel %vm145, %v147, %v143
    %v149 = vmul.f32 %v131, %v148
    %v150 = vrcp.pop %v134
    %v151 = vmul.f32 %v134, %v150
    %v152 = vsub.f32 1.0, %v151
    %v153 = vmul.f32 %v150, %v152
    %v154 = vadd.f32 %v150, %v153
    %vm155 = vweird.f32 %v134
    %vm156 = vweird.f32 %v150
    %vm157 = vmor %vm155, %vm156
    %v158 = vsel %vm157, %v150, %v154
    %v159 = vand.u32 2147483647, %v134
    %vm160 = vcmp.eq.f32.partialorder %v159, 8.507059e+37
    %v161 = vand.u32 %v134, 2147483648
    %v162 = vor.u32 1.1754944e-38, %v161
    %v163 = vsel %vm160, %v162, %v158
    %v164 = vmul.f32 %v132, %v163
    %v165 = vld [vmem:[%s2] sm:$0x1]
    %v167 = vperm.slane %v165, 0
    %v169 = vadd.f32 %v149, %v167
    %v170 = vadd.f32 %v164, %v167
    %v171 = vld [vmem:[#allocation7] sm:$0xff]
    %v172 = vld [vmem:[#allocation7 + $0x8] sm:$0xff]
    %v173 = vld [vmem:[#allocation7 + $0x10] sm:$0xff]
    %v174 = vld [vmem:[#allocation7 + $0x18] sm:$0xff]
    %v175 = vld [vmem:[%s4] sm:$0x1]
    %v177 = vperm.slane %v175, 0
    %v180 = vsel %vm68, %v169, 0
    %v183 = vsel %vm68, %v170, 0
    %185 = vmatpush.msra.mxu0 0.0
    %186 = vmatpush.msra.mxu0 0.0
    %187 = vmatpush.msra.mxu0 0.0
    %188 = vmatpush.msra.mxu0 0.0
    %189 = vmatpush.msra.mxu0 0.0
    %190 = vmatpush.msra.mxu0 0.0
    %191 = vmatpush.msra.mxu0 0.0
    %192 = vmatpush.msra.mxu0 0.0
    %193 = vmatpush.msra.mxu0 0.0
    %194 = vmatpush.msra.mxu0 0.0
    %195 = vmatpush.msra.mxu0 0.0
    %196 = vmatpush.msra.mxu0 0.0
    %197 = vmatpush.msra.mxu0 %v174
    %198 = vmatpush.msra.mxu0 %v173
    %199 = vmatpush.msra.mxu0 %v172
    %200 = vmatpush.msra.mxu0 %v171
    %201 = vmatmul.f32.gmra.mxu0 %v180
    %v202 = vpop.f32.mrf.mxu0
    %v203 = vadd.f32 %v177, %v202
    %204 = vmatmul.f32.gmra.mxu0 %v183
    %v205 = vpop.f32.mrf.mxu0
    %v206 = vadd.f32 %v177, %v205
    %207 = vdwg.mxu0
    %vm208 = vcmask 785408
    %209 = vst.msk [vmem:[#allocation8] sm:$0xff] %vm208, %v203
    %210 = vst.msk [vmem:[#allocation8 + $0x8] sm:$0xff] %vm208, %v206
    // Predicated region
    $region34: #{tpu_custom_call.1} parent=1 // pred_check
      _
    $region35: #{tpu_custom_call.1} parent=1 // pred_check_branch
      %212 = sbr.rel (0) target = $region37
    $region36: #{tpu_custom_call.1} parent=1 // pred_region
      %214 = vsyncadd [#allocation4], 0
      %s215 = sshll.u32 [#allocation8], 4
      %s216 = int_to_ptr.vmem [resolvable:$true] %s215
      %s217 = sshll.u32 %s5, 4
      %s218 = int_to_ptr.hbm [resolvable:$true] %s217
      %223 = dma.vmem_to_hbm [thread:$0]  %s216, 256, %s218, [#allocation4], 128, 128, 8
    $region37: #{tpu_custom_call.1} parent=1 // pred_fallthru
      _
    // Predicated region
    $region38: #{tpu_custom_call.1} parent=1 // pred_check
      _
    $region39: #{tpu_custom_call.1} parent=1 // pred_check_branch
      %225 = sbr.rel (0) target = $region41
    $region40: #{tpu_custom_call.1} parent=1 // pred_region
      %227 = dma.done [#allocation4], 256
    $region41: #{tpu_custom_call.1} parent=1 // pred_fallthru
      _
    %228 = vsyncpa [#allocation3], 1
    %229 = vsyncpa [#allocation6], 1
    %230 = vsyncpa [#allocation4], 1

</llo_original>
